<compile_context>
chip_gen: v7x
topology: tpu7x:2x2x1
jax: 0.10.0
libtpu: 0.0.40
codegen_flags: <defaults>
</compile_context>

<pallas_src>
import numpy as np
import jax
import jax.numpy as jnp
from jax.experimental import pallas as pl
from jax.experimental.pallas import tpu as pltpu

# ---------------------------------------------------------------------------
# Small synthetic hyper-parameters (stand-ins for the global `parameters.*`)
# ---------------------------------------------------------------------------
BATCH = 2            # parameters.batchsize
DNUM = 1             # channels of sig_super  (Phasor_solver.todev(dev, 1))
SPATIAL = 16         # parameters.sig_super_scale * parameters.resolution_down_ver
CROP = 16            # parameters.time_span (power of two, == T so no time pad)
BIN_LEN = 0.05       # parameters.bin_len
WALL_SIZE = 2.0      # parameters.wall_size
SAMPLING_COEFF = 2.0  # parameters.sampling_coeff
CYCLES = 4           # parameters.cycles
C_LIGHT = 3e8


# ---------------------------------------------------------------------------
# Deterministic parameter construction (phasor-field / LCT operators)
# ---------------------------------------------------------------------------
def _waveconvparam(bin_resolution, virtual_wavelength, cycles):
    s_z = bin_resolution * C_LIGHT
    samples = int(round(cycles * virtual_wavelength / s_z))
    num_cycles = samples * s_z / virtual_wavelength
    sigma = 0.3
    grids_k = np.arange(1, samples + 1, dtype=np.float64)
    sin_wave_k = np.sin(2.0 * np.pi * (num_cycles * grids_k) / samples)
    cos_wave_k = np.cos(2.0 * np.pi * (num_cycles * grids_k) / samples)
    n = np.arange(samples, dtype=np.float64) - (samples - 1) / 2.0
    window = np.exp(-(n ** 2) / (2.0 * (samples * sigma) ** 2))
    return cos_wave_k * window, sin_wave_k * window


def _conv_toeplitz(kernel_flipped, tlen):
    # Matrix form of F.conv2d(x, w_reversed, padding=k//2) along the time axis
    # (dropping output row 0 when k is even), i.e. y = C @ x reproduces the
    # PyTorch virtual-wave convolution exactly.
    k = kernel_flipped.shape[0]
    pad = k // 2
    offset = pad if (k % 2 == 1) else pad - 1
    C = np.zeros((tlen, tlen), dtype=np.float64)
    for t in range(tlen):
        for s in range(tlen):
            j = s - t + offset
            if 0 <= j < k:
                C[t, s] = kernel_flipped[j]
    return C


def _resampling_operator(M):
    assert 2 ** int(np.log2(M)) == M
    row = M ** 2
    x = np.arange(row, dtype=np.float64) + 1.0
    colidx = (np.ceil(np.sqrt(x)) - 1).astype(np.int64)
    mtx = np.zeros((row, M), dtype=np.float64)
    mtx[np.arange(row), colidx] = 1.0 / np.sqrt(x)
    for _ in range(int(np.log2(M))):
        mtx = 0.5 * (mtx[0::2, :] + mtx[1::2, :])
    return mtx, mtx.T


def _define_psf(sptial_grid, temprol_grid, slope):
    N, M = sptial_grid, temprol_grid
    x_2N = np.arange(2 * N, dtype=np.float64) / (2 * N - 1) * 2.0 - 1.0
    z_2M = np.arange(2 * M, dtype=np.float64) / (2 * M - 1) * 2.0
    gridy, gridx, gridz = np.meshgrid(x_2N, x_2N, z_2M)
    b = np.abs((4.0 * slope) ** 2 * (gridx ** 2 + gridy ** 2) - gridz)
    cmin = np.min(b, axis=2, keepdims=True)
    d = (np.abs(b - cmin) < 1e-8).astype(np.float64)
    e = d / np.sqrt(np.sum(d))
    f = np.roll(np.roll(e, shift=N, axis=0), shift=N, axis=1)
    return np.transpose(f, (2, 1, 0))          # (2T, 2H, 2W)


def build_phasor_params(spatial, crop, bin_len, wall_size, sampling_coeff, cycles):
    width = wall_size / 2.0
    bin_resolution = bin_len / C_LIGHT
    trange = crop * C_LIGHT * bin_resolution

    s_lamda_limit = wall_size / (spatial - 1)
    virtual_wavelength = sampling_coeff * (s_lamda_limit * 2.0)
    cos_k, sin_k = _waveconvparam(bin_resolution, virtual_wavelength, cycles)

    # PyTorch stores the time-reversed wavelets and applies cross-correlation.
    C_cos = _conv_toeplitz(cos_k[::-1].copy(), crop)
    C_sin = _conv_toeplitz(sin_k[::-1].copy(), crop)

    mtx, mtxi = _resampling_operator(crop)

    # Fold "virtual-wave conv" + "LCT resampling" into single TxT operators,
    # then stack cos/sin into one (2T, T) operator so the kernel issues a
    # single MXU matmul producing the stacked [cos;sin] layout directly.
    A_cos = mtx @ C_cos
    A_sin = mtx @ C_sin
    A_fused = np.concatenate([A_cos, A_sin], axis=0)      # (2T, T)

    slope = width / trange
    psf = _define_psf(spatial, crop, slope)
    invpsf = np.conjugate(np.fft.fftn(psf))               # full-complex (reference)
    invpsf_r = np.conjugate(np.fft.rfftn(psf))            # (2T, 2H, W+1) for rfft path

    return {
        "A_cos": jnp.asarray(A_cos, jnp.float32),
        "A_sin": jnp.asarray(A_sin, jnp.float32),
        "A_fused_bf16": jnp.asarray(A_fused, jnp.bfloat16),
        "mtxi": jnp.asarray(mtxi, jnp.float32),
        "invpsf": jnp.asarray(invpsf, jnp.complex64),
        "invpsf_r": jnp.asarray(invpsf_r, jnp.complex64),
    }


# ---------------------------------------------------------------------------
# Tiling helpers
# ---------------------------------------------------------------------------
def _pad_lanes(x, axis=-1):
    """Pad the lane axis up to a multiple of 128 (lane-dense stores)."""
    n = x.shape[axis]
    pad = (-n) % 128
    if pad == 0:
        return x, n
    widths = [(0, 0)] * x.ndim
    widths[axis] = (0, pad)
    return jnp.pad(x, widths), n


def _choose_lane_tile(n_lanes, n_batch, target=512):
    """Lane-tile width: multiple of 128 dividing n_lanes, close to `target`
    (512-1024 hits ~85% of HBM roofline), preferring choices that leave >= 4
    total grid steps so BlockSpec double-buffering can prefetch (and both v7x
    TensorCores get work)."""
    divisors = [t for t in range(128, n_lanes + 1, 128) if n_lanes % t == 0]
    if not divisors:
        return n_lanes                      # wrapper pads to x128, so not hit
    pipelined = [t for t in divisors if t <= target and n_batch * (n_lanes // t) >= 4]
    if pipelined:
        return max(pipelined)
    capped = [t for t in divisors if t <= target]
    return max(capped) if capped else min(divisors)


def _vmem_limit_bytes(*block_bytes):
    """Explicit scoped-VMEM limit: 2 pipeline buffers per block, 2x headroom,
    >= 8 MiB floor for compiler scratch, capped at v7x's 64 MiB physical."""
    need = 2 * sum(int(b) for b in block_bytes)
    return int(min(max(2 * need + (1 << 20), 8 << 20), 64 << 20))


# ---------------------------------------------------------------------------
# Pallas kernels
# ---------------------------------------------------------------------------
def _time_transform_kernel(a_ref, x_ref, y_ref):
    # a_ref: (2T, T) bf16 resident operator [A_cos; A_sin]
    # x_ref: (1, T, tn) bf16 activation tile, y_ref: (1, 2T, tn) f32.
    # Single fused MXU matmul producing the stacked [cos; sin] layout.
    y_ref[0] = jnp.dot(a_ref[...], x_ref[0], preferred_element_type=jnp.float32)


def time_transform_fused(x_bd, a_fused_bf16):
    """x_bd: (BD, T, HW) -> stacked [cos; sin] data (BD, 2T, HW) float32.

    grid = (BD, HW tiles): no host-side transposes — x is consumed directly as
    (1, T, tn) blocks and the output written as (1, 2T, tn) blocks."""
    BD, T, HW = x_bd.shape
    x_pad, _ = _pad_lanes(x_bd)
    HWp = x_pad.shape[-1]
    tn = _choose_lane_tile(HWp, BD)
    tiles = HWp // tn

    # bf16 at the boundary (f32 accumulate in-kernel). In the full model this
    # cast fuses into the producer of sig_super.
    x_bf16 = x_pad.astype(jnp.bfloat16)

    a_bytes = a_fused_bf16.size * 2
    x_bytes = T * tn * 2
    y_bytes = 2 * T * tn * 4

    y = pl.pallas_call(
        _time_transform_kernel,
        out_shape=jax.ShapeDtypeStruct((BD, 2 * T, HWp), jnp.float32),
        grid=(BD, tiles),
        in_specs=[pl.BlockSpec((2 * T, T), lambda b, j: (0, 0)),
                  pl.BlockSpec((1, T, tn), lambda b, j: (b, 0, j))],
        out_specs=pl.BlockSpec((1, 2 * T, tn), lambda b, j: (b, 0, j)),
        compiler_params=pltpu.CompilerParams(
            dimension_semantics=("parallel", "parallel"),
            vmem_limit_bytes=_vmem_limit_bytes(a_bytes, x_bytes, y_bytes)),
    )(a_fused_bf16, x_bf16)
    return y[:, :, :HW]                     # drop lane padding (no-op if HW % 128 == 0)


def _mag_resample_kernel(mtxi_ref, vol_ref, alb_ref, tmax_ref):
    # Fused per (batch, HW-tile): phasor magnitude -> inverse LCT resampling
    # -> relu -> depth max.  Writes the un-normalised albedo tile and the
    # per-tile spatial max; the global max + divide happen outside (two-phase
    # reduction across HW tiles preserves the original normalisation).
    v0 = vol_ref[0, 0]                                   # (T, tn): separate loads,
    v1 = vol_ref[0, 1]                                   # keep vreg footprint low
    mag = jnp.sqrt(v0 * v0 + v1 * v1)                    # phasor magnitude
    res = jnp.dot(mtxi_ref[...], mag, preferred_element_type=jnp.float32)
    res = jnp.maximum(res, 0.0)                          # F.relu
    alb = jnp.max(res, axis=0, keepdims=True)            # torch.max(dim=2)[0] -> (1, tn)
    alb_ref[0] = alb
    tile_max = jnp.max(alb, axis=-1, keepdims=True)      # (1, 1)
    tmax_ref[0] = jnp.broadcast_to(tile_max, (1, 128))


def mag_resample_tiled(vol, mtxi):
    """vol: (BD, 2, T, HW) f32 -> (un-normalised albedo (BD, 1, HWp),
    per-HW-tile maxima (BD, 1, tiles*128))."""
    BD, _, T, HW = vol.shape
    vol_pad, _ = _pad_lanes(vol)
    HWp = vol_pad.shape[-1]
    tn = _choose_lane_tile(HWp, BD)
    tiles = HWp // tn

    mtxi_bytes = mtxi.size * 4
    vol_bytes = 2 * T * tn * 4
    alb_bytes = tn * 4
    tmax_bytes = 128 * 4

    alb, tmax = pl.pallas_call(
        _mag_resample_kernel,
        out_shape=(jax.ShapeDtypeStruct((BD, 1, HWp), jnp.float32),
                   jax.ShapeDtypeStruct((BD, 1, tiles * 128), jnp.float32)),
        grid=(BD, tiles),
        in_specs=[pl.BlockSpec((T, T), lambda b, j: (0, 0)),
                  pl.BlockSpec((1, 2, T, tn), lambda b, j: (b, 0, 0, j))],
        out_specs=[pl.BlockSpec((1, 1, tn), lambda b, j: (b, 0, j)),
                   pl.BlockSpec((1, 1, 128), lambda b, j: (b, 0, j))],
        compiler_params=pltpu.CompilerParams(
            dimension_semantics=("parallel", "parallel"),
            vmem_limit_bytes=_vmem_limit_bytes(
                mtxi_bytes, vol_bytes, alb_bytes, tmax_bytes)),
    )(mtxi, vol_pad)
    return alb, tmax


# ---------------------------------------------------------------------------
# Forward pass (Pallas path and pure-JAX reference path)
# ---------------------------------------------------------------------------
def step2_phasor_forward(sig_super, P, use_pallas=True):
    B, D, T, H, W = sig_super.shape
    BD, HW = B * D, H * W
    # tbes = [0]*B, tens = [time_span]*B and T == crop -> time padding is a no-op
    x = sig_super.astype(jnp.float32).reshape(BD, T, HW)

    # Step 1+2: virtual-wave time convolution + LCT resampling
    if use_pallas:
        data = time_transform_fused(x, P["A_fused_bf16"])       # (BD, 2T, HW)
        data = data.reshape(BD, 2, T, H, W)                     # contiguous reshape
    else:
        hp = jax.lax.Precision.HIGHEST
        cos_d = jnp.einsum("ij,bjk->bik", P["A_cos"], x, precision=hp)
        sin_d = jnp.einsum("ij,bjk->bik", P["A_sin"], x, precision=hp)
        data = jnp.stack([cos_d, sin_d], axis=1).reshape(BD, 2, T, H, W)

    # zero-pad into the 2T x 2H x 2W LCT volume
    datapad = jnp.pad(data, ((0, 0), (0, 0), (0, T), (0, H), (0, W)))

    if use_pallas:
        # TODO(synk): 3-D FFT/IFFT has no clean Pallas TPU equivalent; kept in XLA.
        # Real-input FFT halves FFT work / complex traffic and drops jnp.real().
        datafre = jnp.fft.rfftn(datapad, axes=(-3, -2, -1))
        # Frequency-domain back-projection kept in plain JAX so XLA fuses it
        # into the irfft input (pure memory-bound elementwise complex multiply).
        refre = datafre * P["invpsf_r"]
        re = jnp.fft.irfftn(refre, s=(2 * T, 2 * H, 2 * W), axes=(-3, -2, -1))
        vol = re[:, :, :T, :H, :W].astype(jnp.float32).reshape(BD, 2, T, HW)

        # Step 4+5: magnitude + inverse resampling + relu + depth max (Pallas,
        # HW-tiled), then global max + exact divide in plain JAX (tiny).
        alb, tmax = mag_resample_tiled(vol, P["mtxi"])
        alb = alb[:, 0, :HW]                                    # (BD, HW)
        m = jnp.max(tmax, axis=-1)                              # (BD, 1)
        m = jnp.where(m < 0.0, 0.0, m)                          # max[max < 0] = 0
        m = jnp.where(m == 0.0, 1e-6, m)                        # max[max == 0] = 1e-6
        return (alb / m).reshape(B, D, H, W)
    else:
        datafre = jnp.fft.fftn(datapad, axes=(-3, -2, -1))
        re = jnp.fft.ifftn(datafre * P["invpsf"], axes=(-3, -2, -1))
        vol = jnp.real(re)[:, :, :T, :H, :W].astype(jnp.float32).reshape(BD, 2, T, HW)
        hp = jax.lax.Precision.HIGHEST
        mag = jnp.sqrt(vol[:, 0] ** 2 + vol[:, 1] ** 2)
        vol_mag = jnp.maximum(
            jnp.einsum("ij,bjk->bik", P["mtxi"], mag, precision=hp), 0.0)
        alb = jnp.max(vol_mag, axis=1)                          # (BD, HW)
        m = jnp.max(alb, axis=1, keepdims=True)
        m = jnp.where(m < 0.0, 0.0, m)
        m = jnp.where(m == 0.0, 1e-6, m)
        return (alb / m).reshape(B, D, H, W)


if __name__ == "__main__":
    key = jax.random.PRNGKey(0)
    sig_super = jax.random.uniform(
        key, (BATCH, DNUM, CROP, SPATIAL, SPATIAL), dtype=jnp.float32)

    P = build_phasor_params(SPATIAL, CROP, BIN_LEN, WALL_SIZE, SAMPLING_COEFF, CYCLES)

    out = jax.block_until_ready(step2_phasor_forward(sig_super, P, use_pallas=True))
    ref = jax.block_until_ready(step2_phasor_forward(sig_super, P, use_pallas=False))

    assert out.shape == (BATCH, DNUM, SPATIAL, SPATIAL)
    assert out.dtype == jnp.float32
    assert bool(jnp.all(jnp.isfinite(out)))
    # bf16 inputs on the fused time-transform matmul are the dominant error
    # source; the 1e-2 budget vs the Precision.HIGHEST reference is accepted.
    max_err = float(jnp.max(jnp.abs(out - ref)))
    assert max_err < 1e-2, f"mismatch vs pure-JAX reference: {max_err}"
    print("KERNEL_OK")
</pallas_src>

<mosaic_0001>
module attributes {stable_mosaic.version = 11 : i64} {
  func.func @_time_transform_kernel(%arg0: i32, %arg1: i32, %arg2: memref<32x16xbf16, #tpu.memory_space<vmem>>, %arg3: memref<1x16x128xbf16, #tpu.memory_space<vmem>>, %arg4: memref<1x32x128xf32, #tpu.memory_space<vmem>>) attributes {dimension_semantics = [#tpu.dimension_semantics<parallel>, #tpu.dimension_semantics<parallel>], iteration_bounds = array<i64: 2, 2>, scalar_prefetch = 0 : i64, scratch_operands = 0 : i64, tpu.core_type = #tpu.core_type<tc>, window_params = [{pipeline_mode = #tpu.pipeline_mode<synchronous>, transform_indices = @transform_0, window_bounds = array<i64: 32, 16>}, {transform_indices = @transform_1, window_bounds = array<i64: 1, 16, 128>}, {transform_indices = @transform_2, window_bounds = array<i64: 1, 32, 128>}]} {
    %c0 = arith.constant 0 : index
    %c0_0 = arith.constant 0 : index
    %0 = vector.load %arg2[%c0, %c0_0] : memref<32x16xbf16, #tpu.memory_space<vmem>>, vector<32x16xbf16>
    %c0_1 = arith.constant 0 : index
    %c0_2 = arith.constant 0 : index
    %c0_3 = arith.constant 0 : index
    %1 = vector.load %arg3[%c0_1, %c0_2, %c0_3] : memref<1x16x128xbf16, #tpu.memory_space<vmem>>, vector<1x16x128xbf16>
    %2 = vector.shape_cast %1 : vector<1x16x128xbf16> to vector<16x128xbf16>
    %cst = arith.constant dense<0.000000e+00> : vector<32x128xf32>
    %3 = tpu.matmul %0, %2, %cst {dimension_numbers = #tpu.dot_dimension_numbers<[1], [0], [0], [1], [0, 0, 1, 1], [], []>} : vector<32x16xbf16>, vector<16x128xbf16>, vector<32x128xf32> -> vector<32x128xf32>
    %c0_4 = arith.constant 0 : index
    %c0_5 = arith.constant 0 : index
    %c0_6 = arith.constant 0 : index
    %4 = vector.load %arg4[%c0_4, %c0_5, %c0_6] : memref<1x32x128xf32, #tpu.memory_space<vmem>>, vector<1x32x128xf32>
    %5 = vector.shape_cast %4 : vector<1x32x128xf32> to vector<32x128xf32>
    %6 = vector.shape_cast %3 : vector<32x128xf32> to vector<1x32x128xf32>
    tpu.vector_store %arg4[%c0_4, %c0_5, %c0_6], %6 {strides = array<i32>} : memref<1x32x128xf32, #tpu.memory_space<vmem>>, vector<1x32x128xf32>,
    return
  }
  func.func @transform_0(%arg0: i32, %arg1: i32) -> (i32, i32) {
    %c0_i32 = arith.constant 0 : i32
    %c0_i32_0 = arith.constant 0 : i32
    %c0_i32_1 = arith.constant 0 : i32
    return %c0_i32, %c0_i32_0 : i32, i32
  }
  func.func @transform_1(%arg0: i32, %arg1: i32) -> (i32, i32, i32) {
    %c0_i32 = arith.constant 0 : i32
    %c0_i32_0 = arith.constant 0 : i32
    return %arg0, %c0_i32, %arg1 : i32, i32, i32
  }
  func.func @transform_2(%arg0: i32, %arg1: i32) -> (i32, i32, i32) {
    %c0_i32 = arith.constant 0 : i32
    %c0_i32_0 = arith.constant 0 : i32
    return %arg0, %c0_i32, %arg1 : i32, i32, i32
  }
}

</mosaic_0001>

<llo_original>
// kernel: tpu_custom_call.1
$region0: #{tpu_custom_call.1}
  #allocation0 [shape = 'u32[]', space=smem, size = 0x4, offset = 0x4, fixed_abs, tag = 'smem constant byte address 0x4 - core index']
  #allocation1 [shape = 'u32[144,128]{1,0:T(1,128)}', space=vmem, size = 0x12000, scoped, tag = 'internal scratch']
  %s0 = inlined_call_operand.vmem [shape: bf16[32,16], index: 0, kind: input, shape index: {}]
  %s1 = inlined_call_operand.hbm [shape: bf16[2,16,256], index: 1, kind: input, shape index: {}]
  %s2 = inlined_call_operand.hbm [shape: f32[2,32,256], index: 2, kind: output, shape index: {}]
  %s3 = sld [smem:[#allocation0]]
  $region45: #{tpu_custom_call.1} parent=0
    _
  %s5 = ssub.s32 1, %s3
  %s6 = scalar_select 0, %s5, %s3
  $region1: #{tpu_custom_call.1} parent=0
    #allocation2 [shape = 'u8[8192]{0}', space=vmem, size = 0x2000, scoped, tag = 'input window, operand 1']
    #allocation3 [shape = 's32[2]{0}', space=sflag, size = 0x8, scoped, tag = 'scoped memory for tpu_custom_call.1']
    #allocation4 [shape = 's32[2]{0}', space=sflag, size = 0x8, scoped, tag = 'scoped memory for tpu_custom_call.1']
    #allocation5 [shape = 'u8[32768]{0}', space=vmem, size = 0x8000, scoped, tag = 'output window, operand 0']
    %7 = vsyncpa [#allocation3], 0
    %s8 = scalar_lea.sflag [#allocation3], 1
    %9 = vsyncpa %s8, 0
    %10 = vsyncpa [#allocation4], 0
    %s11 = scalar_lea.sflag [#allocation4], 1
    %12 = vsyncpa %s11, 0
    loop: start=0, step=1, limit=6
    $region2: #{tpu_custom_call.1} parent=1 // loop_pre_header
      _
    $region3: #{tpu_custom_call.1} parent=1 // loop_header
      %s14 = sphi 0, %s18
      %p15 = scmp.ge.s32.totalorder %s14, 6
      %s21 = sphi 0, %s33
      %s22 = sphi 0, %s29
      %s23 = sphi 0, %s21
      %s24 = sphi 0, %s22
      %s25 = sphi 0, %s23
      %s26 = sphi 0, %s24
      %s34 = sphi 0, %s34
      %s36 = sphi 0, %s34
      %s37 = sphi 0, %s36
      %s51 = sphi 0, %s37
      %s59 = sphi 0, %s61
      %s62 = sphi 0, %s59
      %s63 = sphi 0, %s62
      %s79 = sphi 0, %s63
      %s87 = sphi 0, %s89
      %s90 = sphi 0, %s87
      %s91 = sphi 0, %s90
      %s107 = sphi 0, %s91
    $region4: #{tpu_custom_call.1} parent=1 // loop_header_branch
      %17 = sbr.rel (%p15) target = $region8
    $region5: #{tpu_custom_call.1} parent=1 // loop_body
      %s19 = ssub.s32 %s14, 1
      %s20 = ssub.s32 %s14, 2
      %s27 = sadd.s32 1, %s22
      %p28 = scmp.ge.s32.totalorder %s27, 2
      %s29 = scalar_select %p28, 0, %s27
      %s30 = sadd.s32 1, %s21
      %s31 = scalar_select %p28, %s30, %s21
      %p32 = scmp.ge.s32.totalorder %s31, 2
      %s33 = scalar_select %p32, 0, %s31
      %s35 = sadd.s32 %s34, 1
      %p38 = scmp.eq.s32.totalorder %s14, 3
      %p39 = scmp.ne.s32.totalorder %s34, %s36
      %p40 = scmp.eq.s32.totalorder %s14, 0
      %p41 = por %p39, %p40
      %p42 = scmp.ne.s32.totalorder %s34, %s36
      %p43 = scmp.eq.s32.totalorder %s19, 3
      %p44 = por %p42, %p43
      %p45 = scmp.ne.s32.totalorder %s36, %s37
      %p46 = scmp.eq.s32.totalorder %s19, 0
      %p47 = por %p45, %p46
      %p48 = scmp.ne.s32.totalorder %s36, %s37
      %p49 = scmp.eq.s32.totalorder %s20, 3
      %p50 = por %p48, %p49
      %p52 = scmp.ne.s32.totalorder %s37, %s51
      %p53 = scmp.eq.s32.totalorder %s20, 0
      %p54 = por %p52, %p53
      %s55 = ssub.s32 %s21, %s33
      %s56 = ssub.s32 %s22, %s29
      %s57 = sor.u32 %s55, %s56
      %p58 = scmp.eq.s32.totalorder %s57, 0
      %s60 = sadd.s32 %s59, 1
      %s61 = scalar_select %p58, %s59, %s60
      %p64 = pneg %p58
      %p65 = scmp.eq.s32.totalorder %s14, 3
      %p66 = por %p64, %p65
      %p67 = scmp.ne.s32.totalorder %s59, %s62
      %p68 = scmp.eq.s32.totalorder %s14, 0
      %p69 = por %p67, %p68
      %p70 = scmp.ne.s32.totalorder %s59, %s62
      %p71 = scmp.eq.s32.totalorder %s19, 3
      %p72 = por %p70, %p71
      %p73 = scmp.ne.s32.totalorder %s62, %s63
      %p74 = scmp.eq.s32.totalorder %s19, 0
      %p75 = por %p73, %p74
      %p76 = scmp.ne.s32.totalorder %s62, %s63
      %p77 = scmp.eq.s32.totalorder %s20, 3
      %p78 = por %p76, %p77
      %p80 = scmp.ne.s32.totalorder %s63, %s79
      %p81 = scmp.eq.s32.totalorder %s20, 0
      %p82 = por %p80, %p81
      %s83 = ssub.s32 %s21, %s33
      %s84 = ssub.s32 %s22, %s29
      %s85 = sor.u32 %s83, %s84
      %p86 = scmp.eq.s32.totalorder %s85, 0
      %s88 = sadd.s32 %s87, 1
      %s89 = scalar_select %p86, %s87, %s88
      %p92 = pneg %p86
      %p93 = scmp.eq.s32.totalorder %s14, 3
      %p94 = por %p92, %p93
      %p95 = scmp.ne.s32.totalorder %s87, %s90
      %p96 = scmp.eq.s32.totalorder %s14, 0
      %p97 = por %p95, %p96
      %p98 = scmp.ne.s32.totalorder %s87, %s90
      %p99 = scmp.eq.s32.totalorder %s19, 3
      %p100 = por %p98, %p99
      %p101 = scmp.ne.s32.totalorder %s90, %s91
      %p102 = scmp.eq.s32.totalorder %s19, 0
      %p103 = por %p101, %p102
      %p104 = scmp.ne.s32.totalorder %s90, %s91
      %p105 = scmp.eq.s32.totalorder %s20, 3
      %p106 = por %p104, %p105
      %p108 = scmp.ne.s32.totalorder %s91, %s107
      %p109 = scmp.eq.s32.totalorder %s20, 0
      %p110 = por %p108, %p109
      %p111 = scmp.le.s32.totalorder 1, %s14
      %p112 = scmp.lt.s32.totalorder %s14, 5
      %p113 = pnand %p111, %p112
      %p114 = pneg %p113
      // Predicated region
      $region9: #{tpu_custom_call.1} parent=5 // pred_check
        _
      $region10: #{tpu_custom_call.1} parent=5 // pred_check_branch
        %116 = sbr.rel (%p113) target = $region12
      $region11: #{tpu_custom_call.1} parent=5 // pred_region
        %s117 = ssub.s32 %s14, 1
        // Predicated region
        $region13: #{tpu_custom_call.1} parent=11 // pred_check
          %p118 = pneg %p47
        $region14: #{tpu_custom_call.1} parent=11 // pred_check_branch
          %120 = sbr.rel (%p118) target = $region16
        $region15: #{tpu_custom_call.1} parent=11 // pred_region
          _
        $region16: #{tpu_custom_call.1} parent=11 // pred_fallthru
          _
      $region12: #{tpu_custom_call.1} parent=5 // pred_fallthru
        _
      %p121 = scmp.lt.s32.totalorder %s14, 4
      // Predicated region
      $region17: #{tpu_custom_call.1} parent=5 // pred_check
        %p122 = pneg %p121
      $region18: #{tpu_custom_call.1} parent=5 // pred_check_branch
        %124 = sbr.rel (%p122) target = $region20
      $region19: #{tpu_custom_call.1} parent=5 // pred_region
        // Predicated region
        $region21: #{tpu_custom_call.1} parent=19 // pred_check
          %p125 = pneg %p69
        $region22: #{tpu_custom_call.1} parent=19 // pred_check_branch
          %127 = sbr.rel (%p125) target = $region24
        $region23: #{tpu_custom_call.1} parent=19 // pred_region
          %s128 = sand.u32 %s59, 1
          %s129 = scalar_lea.sflag [#allocation3], %s128
          %s130 = sand.u32 %s59, 1
          %s131 = smul.addr %s130, 8
          %s132 = scalar_lea.vmem [#allocation2], %s131
          %s134 = ssub.s32 128, 128
          %135 = vsyncadd %s129, %s134
          %s136 = smul.addr %s21, 4
          %s137 = sadd.s32 %s22, %s136
          %s138 = smul.addr %s137, 64
          %s139 = scalar_lea.hbm %s1, %s138
          %s140 = sshll.u32 %s132, 4
          %s141 = int_to_ptr.vmem [resolvable:$true] %s140
          %146 = dma.hbm_to_vmem [thread:$0]  %s139, 128, %s141, %s129, 128, 64, 4
        $region24: #{tpu_custom_call.1} parent=19 // pred_fallthru
          _
      $region20: #{tpu_custom_call.1} parent=5 // pred_fallthru
        _
      %p147 = scmp.le.s32.totalorder 1, %s14
      %p148 = scmp.lt.s32.totalorder %s14, 5
      %p149 = pnand %p147, %p148
      %p150 = pneg %p149
      // Predicated region
      $region25: #{tpu_custom_call.1} parent=5 // pred_check
        _
      $region26: #{tpu_custom_call.1} parent=5 // pred_check_branch
        %152 = sbr.rel (%p149) target = $region28
      $region27: #{tpu_custom_call.1} parent=5 // pred_region
        %s153 = ssub.s32 %s14, 1
        %s154 = sand.u32 %s62, 1
        %s155 = scalar_lea.sflag [#allocation3], %s154
        %s156 = sand.u32 %s62, 1
        %s157 = smul.addr %s156, 8
        %s158 = scalar_lea.vmem [#allocation2], %s157
        // Predicated region
        $region29: #{tpu_custom_call.1} parent=27 // pred_check
          %p159 = pneg %p75
        $region30: #{tpu_custom_call.1} parent=27 // pred_check_branch
          %161 = sbr.rel (%p159) target = $region32
        $region31: #{tpu_custom_call.1} parent=27 // pred_region
          %162 = dma.done %s155, 128
        $region32: #{tpu_custom_call.1} parent=27 // pred_fallthru
          _
        %p163 = pneg %p47
        %p164 = pneg %p44
        %s165 = sand.u32 %s62, 1
        %s166 = scalar_lea.sflag [#allocation3], %s165
        %s167 = sand.u32 %s62, 1
        %s168 = smul.addr %s167, 8
        %s169 = scalar_lea.vmem [#allocation2], %s168
        %p170 = pneg %p75
        %p171 = pneg %p72
        %p172 = pneg %p103
        %p173 = pneg %p100
        %s174 = sand.u32 %s90, 1
        %s175 = scalar_lea.sflag [#allocation4], %s174
        %s176 = sand.u32 %s90, 1
        %s177 = smul.addr %s176, 32
        %s178 = scalar_lea.vmem [#allocation5], %s177
        %v180 = vld [vmem:[%s0] sm:$0xf]
        %v181 = vld [vmem:[%s0 + $0x4] sm:$0xf]
        %v182 = vld [vmem:[%s0 + $0x8] sm:$0xf]
        %v183 = vld [vmem:[%s0 + $0xc] sm:$0xf]
        %v184 = vld [vmem:[%s158] sm:$0xf]
        %v185 = vld [vmem:[%s158 + $0x4] sm:$0xf]
        %v190 = vunpack.c.l.b16 %v180
        %v191 = vunpack.c.l.b16 %v181
        %v192 = vunpack.c.l.b16 %v182
        %v193 = vunpack.c.l.b16 %v183
        %v194 = vpack.c.b16 %v191, %v190
        %v195 = vpack.c.b16 %v193, %v192
        %v198 = vunpack.c.l.b16 %v184
        %v199 = vunpack.c.l.b16 %v185
        %v200 = vpack.c.b16 %v199, %v198
        %vm202 = vcmask 130048
        %v204 = vsel %vm202, %v194, 0
        %v207 = vsel %vm202, %v195, 0
        %209 = vmatprep.subr.bf16.mxu0 0
        %210 = vmatpush1.bf16.msra.mxu0 %v200
        %211 = vmatprep.subr.bf16.mxu0 0
        %212 = vmatpush1.bf16.msra.mxu0 0
        %213 = vmatprep.subr.bf16.mxu0 0
        %214 = vmatpush1.bf16.msra.mxu0 0
        %215 = vmatprep.subr.bf16.mxu0 0
        %216 = vmatpush1.bf16.msra.mxu0 0
        %217 = vmatprep.subr.bf16.mxu0 0
        %218 = vmatpush1.bf16.msra.mxu0 0
        %219 = vmatprep.subr.bf16.mxu0 0
        %220 = vmatpush1.bf16.msra.mxu0 0
        %221 = vmatprep.subr.bf16.mxu0 0
        %222 = vmatpush1.bf16.msra.mxu0 0
        %223 = vmatprep.subr.bf16.mxu0 0
        %224 = vmatpush1.bf16.msra.mxu0 0
        %225 = vmatprep.subr.bf16.mxu0 0
        %226 = vmatpush1.bf16.msra.mxu0 0
        %227 = vmatprep.subr.bf16.mxu0 0
        %228 = vmatpush1.bf16.msra.mxu0 0
        %229 = vmatprep.subr.bf16.mxu0 0
        %230 = vmatpush1.bf16.msra.mxu0 0
        %231 = vmatprep.subr.bf16.mxu0 0
        %232 = vmatpush1.bf16.msra.mxu0 0
        %233 = vmatprep.subr.bf16.mxu0 0
        %234 = vmatpush1.bf16.msra.mxu0 0
        %235 = vmatprep.subr.bf16.mxu0 0
        %236 = vmatpush1.bf16.msra.mxu0 0
        %237 = vmatprep.subr.bf16.mxu0 0
        %238 = vmatpush1.bf16.msra.mxu0 0
        %239 = vmatprep.subr.bf16.mxu0 0
        %240 = vmatpush1.bf16.msra.mxu0 0
        %241 = vmatprep.mubr.bf16.mxu0 0
        %242 = vmatmul.mubr.bf16.gmra.mrb[0].mxu0 %v204
        %v243 = vpop.f32.mrb[0].mxu0
        %v244 = vadd.f32 0.0, %v243
        %v245 = vpop.f32.mrb[0].mxu0
        %v246 = vpop.f32.mrb[0].mxu0
        %v247 = vadd.f32 0.0, %v246
        %v248 = vpop.f32.mrb[0].mxu0
        %249 = vmatprep.mubr.bf16.mxu0 0
        %250 = vmatmul.mubr.bf16.gmra.mrb[0].mxu0 %v207
        %v251 = vpop.f32.mrb[0].mxu0
        %v252 = vadd.f32 0.0, %v251
        %v253 = vpop.f32.mrb[0].mxu0
        %v254 = vpop.f32.mrb[0].mxu0
        %v255 = vadd.f32 0.0, %v254
        %v256 = vpop.f32.mrb[0].mxu0
        %257 = vdwg.mxu0
        %258 = vst [vmem:[%s178] sm:$0xff] %v244
        %259 = vst [vmem:[%s178 + $0x8] sm:$0xff] %v247
        %260 = vst [vmem:[%s178 + $0x10] sm:$0xff] %v252
        %261 = vst [vmem:[%s178 + $0x18] sm:$0xff] %v255
        %s262 = sand.u32 %s90, 1
        %s263 = scalar_lea.sflag [#allocation4], %s262
        %s264 = sand.u32 %s90, 1
        %s265 = smul.addr %s264, 32
        %s266 = scalar_lea.vmem [#allocation5], %s265
        // Predicated region
        $region33: #{tpu_custom_call.1} parent=27 // pred_check
          %p267 = pneg %p100
        $region34: #{tpu_custom_call.1} parent=27 // pred_check_branch
          %269 = sbr.rel (%p267) target = $region36
        $region35: #{tpu_custom_call.1} parent=27 // pred_region
          %s271 = ssub.s32 512, 512
          %272 = vsyncadd %s263, %s271
          %s273 = smul.addr %s23, 8
          %s274 = sadd.s32 %s24, %s273
          %s275 = smul.addr %s274, 128
          %s276 = scalar_lea.hbm %s2, %s275
          %s277 = sshll.u32 %s266, 4
          %s278 = int_to_ptr.vmem [resolvable:$true] %s277
          %283 = dma.vmem_to_hbm [thread:$0]  %s278, 512, %s276, %s263, 128, 256, 8
        $region36: #{tpu_custom_call.1} parent=27 // pred_fallthru
          _
      $region28: #{tpu_custom_call.1} parent=5 // pred_fallthru
        _
      %p284 = scmp.le.s32.totalorder 2, %s14
      // Predicated region
      $region37: #{tpu_custom_call.1} parent=5 // pred_check
        %p285 = pneg %p284
      $region38: #{tpu_custom_call.1} parent=5 // pred_check_branch
        %287 = sbr.rel (%p285) target = $region40
      $region39: #{tpu_custom_call.1} parent=5 // pred_region
        %s288 = ssub.s32 %s14, 2
        // Predicated region
        $region41: #{tpu_custom_call.1} parent=39 // pred_check
          %p289 = pneg %p106
        $region42: #{tpu_custom_call.1} parent=39 // pred_check_branch
          %291 = sbr.rel (%p289) target = $region44
        $region43: #{tpu_custom_call.1} parent=39 // pred_region
          %s292 = sand.u32 %s91, 1
          %s293 = scalar_lea.sflag [#allocation4], %s292
          %s294 = sand.u32 %s91, 1
          %s295 = smul.addr %s294, 32
          %s296 = scalar_lea.vmem [#allocation5], %s295
          %297 = dma.done %s293, 512
        $region44: #{tpu_custom_call.1} parent=39 // pred_fallthru
          _
      $region40: #{tpu_custom_call.1} parent=5 // pred_fallthru
        _
    $region6: #{tpu_custom_call.1} parent=1 // loop_footer
      %s18 = sadd.s32 1, %s14
    $region7: #{tpu_custom_call.1} parent=1 // loop_footer_branch
      %13 = sbr.rel target = $region3
    $region8: #{tpu_custom_call.1} parent=1 // loop_exit
      _
    %298 = vsyncpa [#allocation3], 1
    %s299 = scalar_lea.sflag [#allocation3], 1
    %300 = vsyncpa %s299, 1
    %301 = vsyncpa [#allocation4], 1
    %s302 = scalar_lea.sflag [#allocation4], 1
    %303 = vsyncpa %s302, 1

</llo_original>
